<compile_context>
chip_gen: v7x
topology: tpu7x:2x2x1
jax: 0.10.0
libtpu: 0.0.40
codegen_flags: <defaults>
</compile_context>

<pallas_src>
import functools
import math

import jax
import jax.numpy as jnp
from jax.experimental import pallas as pl
from jax.experimental.pallas import tpu as pltpu


def _fused_mhsa_kernel(q_ref, k_ref, v_ref, wo_ref, bo_ref, o_ref, hcat_ref, *,
                       h, d_k, d_v, scale):
    """One batch element: all-head attention + fused fc_o projection.

    q_ref   : (1, nq, d_model)      k_ref/v_ref: (1, nk, d_model)
    wo_ref  : (h*d_v, d_model)      fc_o weight, pre-transposed on the host
    bo_ref  : (1, d_model)          fc_o bias
    o_ref   : (1, nq, d_model)      merged + projected output (lane dense)
    hcat_ref: (nq, h*d_v) f32       VMEM scratch of lane-concatenated heads
    """
    q = q_ref[0]          # (nq, d_model), native dtype straight to the MXU
    k = k_ref[0]          # (nk, d_model)
    v = v_ref[0]          # (nk, d_model)

    # h is small & static -> unrolled loop; each head is a static lane slice.
    # TODO(synk): for production d_k not a multiple of 128, reshape on the host
    # to (b_s*h, n, d_k) + a head grid axis to get lane-aligned per-head tiles.
    for head in range(h):
        # Fold 1/sqrt(d_k) into q once (nq*d_k muls instead of nq*nk).
        qh = q[:, head * d_k:(head + 1) * d_k] * scale        # (nq, d_k)
        kh = k[:, head * d_k:(head + 1) * d_k]                # (nk, d_k)
        vh = v[:, head * d_v:(head + 1) * d_v]                # (nk, d_v)

        # att = (qh*scale) @ kh^T, contracting last dims (no explicit .T).
        att = jax.lax.dot_general(
            qh, kh, (((1,), (1,)), ((), ())),
            preferred_element_type=jnp.float32)               # (nq, nk) f32

        # Numerically-stable softmax; normalization deferred past the PV dot.
        m = jnp.max(att, axis=-1, keepdims=True)
        e = jnp.exp(att - m)                                  # (nq, nk) f32
        s = jnp.sum(e, axis=-1, keepdims=True)                # (nq, 1)  f32

        # TODO(synk): nn.Dropout(0.1) treated as identity (eval / inference).
        # TODO(synk): optional attention_mask / attention_weights paths not
        # implemented (module's default-None path only).

        oh = jnp.dot(e.astype(v.dtype), vh,
                     preferred_element_type=jnp.float32)      # (nq, d_v) f32
        oh = oh * (1.0 / s)        # exact reciprocal on (nq,1), broadcast mul

        # Lane-concatenate this head's output into the VMEM scratch.
        hcat_ref[:, head * d_v:(head + 1) * d_v] = oh

    # Single fc_o matmul: contraction depth = h*d_v = d_model (fills the MXU),
    # replacing h small d_v-deep matmuls and the serial accumulator chain.
    heads_cat = hcat_ref[...]                                  # (nq, h*d_v)
    out = jnp.dot(heads_cat.astype(wo_ref.dtype), wo_ref[...],
                  preferred_element_type=jnp.float32)          # (nq, d_model)
    o_ref[0] = (out + bo_ref[...].astype(jnp.float32)).astype(o_ref.dtype)


def simplified_sdpa(queries, keys, values, w_o, b_o, h):
    """Forward pass of SimplifiedScaledDotProductAttention.

    queries: (b_s, nq, d_model), keys/values: (b_s, nk, d_model)
    w_o: (d_model, h*d_v) torch nn.Linear weight layout; b_o: (d_model,)
    """
    b_s, nq, d_model = queries.shape
    nk = keys.shape[1]
    assert d_model % h == 0, "d_model must be divisible by h"
    d_k = d_model // h
    d_v = d_model // h
    scale = 1.0 / math.sqrt(d_k)

    # fc_o weight is a constant parameter: transpose once on the host so the
    # kernel never transposes in VMEM.  y = x @ w_o.T + b  ==  x @ wo_t + b.
    wo_t = jnp.transpose(w_o)            # (h*d_v, d_model)
    bo_2d = b_o.reshape(1, d_model)

    # Advisory cost hint so XLA can overlap the custom call with neighbours.
    flops = (b_s * h * (2 * nq * nk * d_k + 2 * nq * nk * d_v)
             + b_s * nq * 2 * (h * d_v) * d_model)
    transcendentals = b_s * h * nq * (nk + 1)     # exp + per-row reciprocal
    itemsize = jnp.dtype(queries.dtype).itemsize
    bytes_accessed = itemsize * (
        2 * b_s * nq * d_model            # Q in, O out
        + 2 * b_s * nk * d_model          # K, V
        + (h * d_v) * d_model + d_model)  # weight + bias

    kernel = functools.partial(_fused_mhsa_kernel, h=h, d_k=d_k, d_v=d_v,
                               scale=scale)

    # NOTE(perf): for production-size nk, add an "arbitrary" kv grid axis with
    # a flash-style online-softmax accumulator so K/V blocks stay within the
    # VMEM budget (mandatory on v7x: 64 MiB VMEM); at these sizes one kv block
    # per batch element fits comfortably.  For multi-thousand d_model on v7x
    # also single-buffer / stream the resident fc_o weight.  Callers should
    # pass bf16 Q/K/V for peak MXU throughput; the kernel keeps inputs in
    # their native dtype and accumulates in f32.
    out = pl.pallas_call(
        kernel,
        out_shape=jax.ShapeDtypeStruct((b_s, nq, d_model), queries.dtype),
        grid=(b_s,),
        in_specs=[
            pl.BlockSpec((1, nq, d_model), lambda b: (b, 0, 0)),
            pl.BlockSpec((1, nk, d_model), lambda b: (b, 0, 0)),
            pl.BlockSpec((1, nk, d_model), lambda b: (b, 0, 0)),
            pl.BlockSpec((h * d_v, d_model), lambda b: (0, 0)),  # resident weight
            pl.BlockSpec((1, d_model), lambda b: (0, 0)),        # resident bias
        ],
        out_specs=pl.BlockSpec((1, nq, d_model), lambda b: (b, 0, 0)),
        scratch_shapes=[pltpu.VMEM((nq, h * d_v), jnp.float32)],
        compiler_params=pltpu.CompilerParams(
            dimension_semantics=("parallel",),        # megacore over batch
            vmem_limit_bytes=48 * 1024 * 1024),       # safe on v5e/v6e/v7x
        cost_estimate=pl.CostEstimate(
            flops=flops, transcendentals=transcendentals,
            bytes_accessed=bytes_accessed),
    )(queries, keys, values, wo_t, bo_2d)
    return out


def _reference(queries, keys, values, w_o, b_o, h):
    b_s, nq, d_model = queries.shape
    nk = keys.shape[1]
    d_k = d_model // h
    d_v = d_model // h
    q = queries.reshape(b_s, nq, h, d_k).transpose(0, 2, 1, 3)
    k = keys.reshape(b_s, nk, h, d_k).transpose(0, 2, 3, 1)
    v = values.reshape(b_s, nk, h, d_v).transpose(0, 2, 1, 3)
    att = jnp.matmul(q, k) / math.sqrt(d_k)
    att = jax.nn.softmax(att, axis=-1)
    out = jnp.matmul(att, v).transpose(0, 2, 1, 3).reshape(b_s, nq, h * d_v)
    return out @ w_o.T + b_o


if __name__ == "__main__":
    # Small shapes consistent with the module's forward; d_model lane-dense.
    b_s, nq, nk = 2, 8, 8
    d_model, h = 128, 4          # d_k = d_v = 32

    key = jax.random.PRNGKey(0)
    kq, kk, kv, kw = jax.random.split(key, 4)
    queries = jax.random.normal(kq, (b_s, nq, d_model), dtype=jnp.float32)
    keys = jax.random.normal(kk, (b_s, nk, d_model), dtype=jnp.float32)
    values = jax.random.normal(kv, (b_s, nk, d_model), dtype=jnp.float32)

    # fc_o: nn.Linear(h*d_v, d_model); init.normal_(weight, std=0.001), bias=0.
    d_v = d_model // h
    w_o = 0.001 * jax.random.normal(kw, (d_model, h * d_v), dtype=jnp.float32)
    b_o = jnp.zeros((d_model,), dtype=jnp.float32)

    out = simplified_sdpa(queries, keys, values, w_o, b_o, h)
    out = jax.block_until_ready(out)

    ref = _reference(queries, keys, values, w_o, b_o, h)
    assert out.shape == (b_s, nq, d_model)
    assert jnp.allclose(out, ref, atol=1e-3, rtol=1e-3), \
        float(jnp.max(jnp.abs(out - ref)))

    print("KERNEL_OK")
</pallas_src>

<mosaic_0001>
module attributes {stable_mosaic.version = 11 : i64} {
  func.func @_fused_mhsa_kernel(%arg0: i32, %arg1: memref<1x8x128xf32, #tpu.memory_space<vmem>>, %arg2: memref<1x8x128xf32, #tpu.memory_space<vmem>>, %arg3: memref<1x8x128xf32, #tpu.memory_space<vmem>>, %arg4: memref<128x128xf32, #tpu.memory_space<vmem>>, %arg5: memref<1x128xf32, #tpu.memory_space<vmem>>, %arg6: memref<1x8x128xf32, #tpu.memory_space<vmem>>, %arg7: memref<8x128xf32, #tpu.memory_space<vmem>>) attributes {dimension_semantics = [#tpu.dimension_semantics<parallel>], iteration_bounds = array<i64: 2>, scalar_prefetch = 0 : i64, scratch_operands = 1 : i64, tpu.core_type = #tpu.core_type<tc>, window_params = [{transform_indices = @transform_0, window_bounds = array<i64: 1, 8, 128>}, {transform_indices = @transform_1, window_bounds = array<i64: 1, 8, 128>}, {transform_indices = @transform_2, window_bounds = array<i64: 1, 8, 128>}, {pipeline_mode = #tpu.pipeline_mode<synchronous>, transform_indices = @transform_3, window_bounds = array<i64: 128, 128>}, {pipeline_mode = #tpu.pipeline_mode<synchronous>, transform_indices = @transform_4, window_bounds = array<i64: 1, 128>}, {transform_indices = @transform_5, window_bounds = array<i64: 1, 8, 128>}]} {
    %c0 = arith.constant 0 : index
    %c0_0 = arith.constant 0 : index
    %c0_1 = arith.constant 0 : index
    %0 = vector.load %arg1[%c0, %c0_0, %c0_1] : memref<1x8x128xf32, #tpu.memory_space<vmem>>, vector<1x8x128xf32>
    %1 = vector.shape_cast %0 : vector<1x8x128xf32> to vector<8x128xf32>
    %c0_2 = arith.constant 0 : index
    %c0_3 = arith.constant 0 : index
    %c0_4 = arith.constant 0 : index
    %2 = vector.load %arg2[%c0_2, %c0_3, %c0_4] : memref<1x8x128xf32, #tpu.memory_space<vmem>>, vector<1x8x128xf32>
    %3 = vector.shape_cast %2 : vector<1x8x128xf32> to vector<8x128xf32>
    %c0_5 = arith.constant 0 : index
    %c0_6 = arith.constant 0 : index
    %c0_7 = arith.constant 0 : index
    %4 = vector.load %arg3[%c0_5, %c0_6, %c0_7] : memref<1x8x128xf32, #tpu.memory_space<vmem>>, vector<1x8x128xf32>
    %5 = vector.shape_cast %4 : vector<1x8x128xf32> to vector<8x128xf32>
    %6 = vector.extract_strided_slice %1 {offsets = [0, 0], sizes = [8, 32], strides = [1, 1]} : vector<8x128xf32> to vector<8x32xf32>
    %cst = arith.constant 0.176776692 : f32
    %7 = vector.broadcast %cst : f32 to vector<8x32xf32>
    %8 = arith.mulf %6, %7 : vector<8x32xf32>
    %9 = vector.extract_strided_slice %3 {offsets = [0, 0], sizes = [8, 32], strides = [1, 1]} : vector<8x128xf32> to vector<8x32xf32>
    %10 = vector.extract_strided_slice %5 {offsets = [0, 0], sizes = [8, 32], strides = [1, 1]} : vector<8x128xf32> to vector<8x32xf32>
    %cst_8 = arith.constant dense<0.000000e+00> : vector<8x8xf32>
    %11 = tpu.matmul %8, %9, %cst_8 {dimension_numbers = #tpu.dot_dimension_numbers<[1], [1], [0], [0], [0, 0, 1, 0], [], []>} : vector<8x32xf32>, vector<8x32xf32>, vector<8x8xf32> -> vector<8x8xf32>
    %cst_9 = arith.constant dense<0xFF800000> : vector<8xf32>
    %12 = vector.multi_reduction <maximumf>, %11, %cst_9 [1] : vector<8x8xf32> to vector<8xf32>
    %13 = vector.shape_cast %12 : vector<8xf32> to vector<8x1xf32>
    %14 = vector.broadcast %13 : vector<8x1xf32> to vector<8x8xf32>
    %15 = arith.subf %11, %14 : vector<8x8xf32>
    %16 = math.exp %15 : vector<8x8xf32>
    %cst_10 = arith.constant dense<0.000000e+00> : vector<8xf32>
    %17 = vector.multi_reduction <add>, %16, %cst_10 [1] : vector<8x8xf32> to vector<8xf32>
    %18 = vector.shape_cast %17 : vector<8xf32> to vector<8x1xf32>
    %cst_11 = arith.constant dense<0.000000e+00> : vector<8x32xf32>
    %19 = tpu.matmul %16, %10, %cst_11 {dimension_numbers = #tpu.dot_dimension_numbers<[1], [0], [0], [1], [0, 0, 1, 1], [], []>} : vector<8x8xf32>, vector<8x32xf32>, vector<8x32xf32> -> vector<8x32xf32>
    %cst_12 = arith.constant 1.000000e+00 : f32
    %20 = vector.broadcast %cst_12 : f32 to vector<8x1xf32>
    %21 = arith.divf %20, %18 : vector<8x1xf32>
    %22 = vector.broadcast %21 : vector<8x1xf32> to vector<8x32xf32>
    %23 = arith.mulf %19, %22 : vector<8x32xf32>
    %c0_13 = arith.constant 0 : index
    %c0_14 = arith.constant 0 : index
    %24 = vector.load %arg7[%c0_13, %c0_14] : memref<8x128xf32, #tpu.memory_space<vmem>>, vector<8x32xf32>
    tpu.vector_store %arg7[%c0_13, %c0_14], %23 {strides = array<i32>} : memref<8x128xf32, #tpu.memory_space<vmem>>, vector<8x32xf32>,
    %25 = vector.extract_strided_slice %1 {offsets = [0, 32], sizes = [8, 32], strides = [1, 1]} : vector<8x128xf32> to vector<8x32xf32>
    %cst_15 = arith.constant 0.176776692 : f32
    %26 = vector.broadcast %cst_15 : f32 to vector<8x32xf32>
    %27 = arith.mulf %25, %26 : vector<8x32xf32>
    %28 = vector.extract_strided_slice %3 {offsets = [0, 32], sizes = [8, 32], strides = [1, 1]} : vector<8x128xf32> to vector<8x32xf32>
    %29 = vector.extract_strided_slice %5 {offsets = [0, 32], sizes = [8, 32], strides = [1, 1]} : vector<8x128xf32> to vector<8x32xf32>
    %cst_16 = arith.constant dense<0.000000e+00> : vector<8x8xf32>
    %30 = tpu.matmul %27, %28, %cst_16 {dimension_numbers = #tpu.dot_dimension_numbers<[1], [1], [0], [0], [0, 0, 1, 0], [], []>} : vector<8x32xf32>, vector<8x32xf32>, vector<8x8xf32> -> vector<8x8xf32>
    %cst_17 = arith.constant dense<0xFF800000> : vector<8xf32>
    %31 = vector.multi_reduction <maximumf>, %30, %cst_17 [1] : vector<8x8xf32> to vector<8xf32>
    %32 = vector.shape_cast %31 : vector<8xf32> to vector<8x1xf32>
    %33 = vector.broadcast %32 : vector<8x1xf32> to vector<8x8xf32>
    %34 = arith.subf %30, %33 : vector<8x8xf32>
    %35 = math.exp %34 : vector<8x8xf32>
    %cst_18 = arith.constant dense<0.000000e+00> : vector<8xf32>
    %36 = vector.multi_reduction <add>, %35, %cst_18 [1] : vector<8x8xf32> to vector<8xf32>
    %37 = vector.shape_cast %36 : vector<8xf32> to vector<8x1xf32>
    %cst_19 = arith.constant dense<0.000000e+00> : vector<8x32xf32>
    %38 = tpu.matmul %35, %29, %cst_19 {dimension_numbers = #tpu.dot_dimension_numbers<[1], [0], [0], [1], [0, 0, 1, 1], [], []>} : vector<8x8xf32>, vector<8x32xf32>, vector<8x32xf32> -> vector<8x32xf32>
    %cst_20 = arith.constant 1.000000e+00 : f32
    %39 = vector.broadcast %cst_20 : f32 to vector<8x1xf32>
    %40 = arith.divf %39, %37 : vector<8x1xf32>
    %41 = vector.broadcast %40 : vector<8x1xf32> to vector<8x32xf32>
    %42 = arith.mulf %38, %41 : vector<8x32xf32>
    %c0_21 = arith.constant 0 : index
    %c32 = arith.constant 32 : index
    %43 = vector.load %arg7[%c0_21, %c32] : memref<8x128xf32, #tpu.memory_space<vmem>>, vector<8x32xf32>
    tpu.vector_store %arg7[%c0_21, %c32], %42 {strides = array<i32>} : memref<8x128xf32, #tpu.memory_space<vmem>>, vector<8x32xf32>,
    %44 = vector.extract_strided_slice %1 {offsets = [0, 64], sizes = [8, 32], strides = [1, 1]} : vector<8x128xf32> to vector<8x32xf32>
    %cst_22 = arith.constant 0.176776692 : f32
    %45 = vector.broadcast %cst_22 : f32 to vector<8x32xf32>
    %46 = arith.mulf %44, %45 : vector<8x32xf32>
    %47 = vector.extract_strided_slice %3 {offsets = [0, 64], sizes = [8, 32], strides = [1, 1]} : vector<8x128xf32> to vector<8x32xf32>
    %48 = vector.extract_strided_slice %5 {offsets = [0, 64], sizes = [8, 32], strides = [1, 1]} : vector<8x128xf32> to vector<8x32xf32>
    %cst_23 = arith.constant dense<0.000000e+00> : vector<8x8xf32>
    %49 = tpu.matmul %46, %47, %cst_23 {dimension_numbers = #tpu.dot_dimension_numbers<[1], [1], [0], [0], [0, 0, 1, 0], [], []>} : vector<8x32xf32>, vector<8x32xf32>, vector<8x8xf32> -> vector<8x8xf32>
    %cst_24 = arith.constant dense<0xFF800000> : vector<8xf32>
    %50 = vector.multi_reduction <maximumf>, %49, %cst_24 [1] : vector<8x8xf32> to vector<8xf32>
    %51 = vector.shape_cast %50 : vector<8xf32> to vector<8x1xf32>
    %52 = vector.broadcast %51 : vector<8x1xf32> to vector<8x8xf32>
    %53 = arith.subf %49, %52 : vector<8x8xf32>
    %54 = math.exp %53 : vector<8x8xf32>
    %cst_25 = arith.constant dense<0.000000e+00> : vector<8xf32>
    %55 = vector.multi_reduction <add>, %54, %cst_25 [1] : vector<8x8xf32> to vector<8xf32>
    %56 = vector.shape_cast %55 : vector<8xf32> to vector<8x1xf32>
    %cst_26 = arith.constant dense<0.000000e+00> : vector<8x32xf32>
    %57 = tpu.matmul %54, %48, %cst_26 {dimension_numbers = #tpu.dot_dimension_numbers<[1], [0], [0], [1], [0, 0, 1, 1], [], []>} : vector<8x8xf32>, vector<8x32xf32>, vector<8x32xf32> -> vector<8x32xf32>
    %cst_27 = arith.constant 1.000000e+00 : f32
    %58 = vector.broadcast %cst_27 : f32 to vector<8x1xf32>
    %59 = arith.divf %58, %56 : vector<8x1xf32>
    %60 = vector.broadcast %59 : vector<8x1xf32> to vector<8x32xf32>
    %61 = arith.mulf %57, %60 : vector<8x32xf32>
    %c0_28 = arith.constant 0 : index
    %c64 = arith.constant 64 : index
    %62 = vector.load %arg7[%c0_28, %c64] : memref<8x128xf32, #tpu.memory_space<vmem>>, vector<8x32xf32>
    tpu.vector_store %arg7[%c0_28, %c64], %61 {strides = array<i32>} : memref<8x128xf32, #tpu.memory_space<vmem>>, vector<8x32xf32>,
    %63 = vector.extract_strided_slice %1 {offsets = [0, 96], sizes = [8, 32], strides = [1, 1]} : vector<8x128xf32> to vector<8x32xf32>
    %cst_29 = arith.constant 0.176776692 : f32
    %64 = vector.broadcast %cst_29 : f32 to vector<8x32xf32>
    %65 = arith.mulf %63, %64 : vector<8x32xf32>
    %66 = vector.extract_strided_slice %3 {offsets = [0, 96], sizes = [8, 32], strides = [1, 1]} : vector<8x128xf32> to vector<8x32xf32>
    %67 = vector.extract_strided_slice %5 {offsets = [0, 96], sizes = [8, 32], strides = [1, 1]} : vector<8x128xf32> to vector<8x32xf32>
    %cst_30 = arith.constant dense<0.000000e+00> : vector<8x8xf32>
    %68 = tpu.matmul %65, %66, %cst_30 {dimension_numbers = #tpu.dot_dimension_numbers<[1], [1], [0], [0], [0, 0, 1, 0], [], []>} : vector<8x32xf32>, vector<8x32xf32>, vector<8x8xf32> -> vector<8x8xf32>
    %cst_31 = arith.constant dense<0xFF800000> : vector<8xf32>
    %69 = vector.multi_reduction <maximumf>, %68, %cst_31 [1] : vector<8x8xf32> to vector<8xf32>
    %70 = vector.shape_cast %69 : vector<8xf32> to vector<8x1xf32>
    %71 = vector.broadcast %70 : vector<8x1xf32> to vector<8x8xf32>
    %72 = arith.subf %68, %71 : vector<8x8xf32>
    %73 = math.exp %72 : vector<8x8xf32>
    %cst_32 = arith.constant dense<0.000000e+00> : vector<8xf32>
    %74 = vector.multi_reduction <add>, %73, %cst_32 [1] : vector<8x8xf32> to vector<8xf32>
    %75 = vector.shape_cast %74 : vector<8xf32> to vector<8x1xf32>
    %cst_33 = arith.constant dense<0.000000e+00> : vector<8x32xf32>
    %76 = tpu.matmul %73, %67, %cst_33 {dimension_numbers = #tpu.dot_dimension_numbers<[1], [0], [0], [1], [0, 0, 1, 1], [], []>} : vector<8x8xf32>, vector<8x32xf32>, vector<8x32xf32> -> vector<8x32xf32>
    %cst_34 = arith.constant 1.000000e+00 : f32
    %77 = vector.broadcast %cst_34 : f32 to vector<8x1xf32>
    %78 = arith.divf %77, %75 : vector<8x1xf32>
    %79 = vector.broadcast %78 : vector<8x1xf32> to vector<8x32xf32>
    %80 = arith.mulf %76, %79 : vector<8x32xf32>
    %c0_35 = arith.constant 0 : index
    %c96 = arith.constant 96 : index
    %81 = vector.load %arg7[%c0_35, %c96] : memref<8x128xf32, #tpu.memory_space<vmem>>, vector<8x32xf32>
    tpu.vector_store %arg7[%c0_35, %c96], %80 {strides = array<i32>} : memref<8x128xf32, #tpu.memory_space<vmem>>, vector<8x32xf32>,
    %c0_36 = arith.constant 0 : index
    %c0_37 = arith.constant 0 : index
    %82 = vector.load %arg7[%c0_36, %c0_37] : memref<8x128xf32, #tpu.memory_space<vmem>>, vector<8x128xf32>
    %c0_38 = arith.constant 0 : index
    %c0_39 = arith.constant 0 : index
    %83 = vector.load %arg4[%c0_38, %c0_39] : memref<128x128xf32, #tpu.memory_space<vmem>>, vector<128x128xf32>
    %cst_40 = arith.constant dense<0.000000e+00> : vector<8x128xf32>
    %84 = tpu.matmul %82, %83, %cst_40 {dimension_numbers = #tpu.dot_dimension_numbers<[1], [0], [0], [1], [0, 0, 1, 1], [], []>} : vector<8x128xf32>, vector<128x128xf32>, vector<8x128xf32> -> vector<8x128xf32>
    %c0_41 = arith.constant 0 : index
    %c0_42 = arith.constant 0 : index
    %85 = vector.load %arg5[%c0_41, %c0_42] : memref<1x128xf32, #tpu.memory_space<vmem>>, vector<1x128xf32>
    %86 = vector.broadcast %85 : vector<1x128xf32> to vector<8x128xf32>
    %87 = arith.addf %84, %86 : vector<8x128xf32>
    %c0_43 = arith.constant 0 : index
    %c0_44 = arith.constant 0 : index
    %c0_45 = arith.constant 0 : index
    %88 = vector.load %arg6[%c0_43, %c0_44, %c0_45] : memref<1x8x128xf32, #tpu.memory_space<vmem>>, vector<1x8x128xf32>
    %89 = vector.shape_cast %88 : vector<1x8x128xf32> to vector<8x128xf32>
    %90 = vector.shape_cast %87 : vector<8x128xf32> to vector<1x8x128xf32>
    tpu.vector_store %arg6[%c0_43, %c0_44, %c0_45], %90 {strides = array<i32>} : memref<1x8x128xf32, #tpu.memory_space<vmem>>, vector<1x8x128xf32>,
    return
  }
  func.func @transform_0(%arg0: i32) -> (i32, i32, i32) {
    %c0_i32 = arith.constant 0 : i32
    %c0_i32_0 = arith.constant 0 : i32
    %c0_i32_1 = arith.constant 0 : i32
    return %arg0, %c0_i32, %c0_i32_0 : i32, i32, i32
  }
  func.func @transform_1(%arg0: i32) -> (i32, i32, i32) {
    %c0_i32 = arith.constant 0 : i32
    %c0_i32_0 = arith.constant 0 : i32
    %c0_i32_1 = arith.constant 0 : i32
    return %arg0, %c0_i32, %c0_i32_0 : i32, i32, i32
  }
  func.func @transform_2(%arg0: i32) -> (i32, i32, i32) {
    %c0_i32 = arith.constant 0 : i32
    %c0_i32_0 = arith.constant 0 : i32
    %c0_i32_1 = arith.constant 0 : i32
    return %arg0, %c0_i32, %c0_i32_0 : i32, i32, i32
  }
  func.func @transform_3(%arg0: i32) -> (i32, i32) {
    %c0_i32 = arith.constant 0 : i32
    %c0_i32_0 = arith.constant 0 : i32
    %c0_i32_1 = arith.constant 0 : i32
    return %c0_i32, %c0_i32_0 : i32, i32
  }
  func.func @transform_4(%arg0: i32) -> (i32, i32) {
    %c0_i32 = arith.constant 0 : i32
    %c0_i32_0 = arith.constant 0 : i32
    %c0_i32_1 = arith.constant 0 : i32
    return %c0_i32, %c0_i32_0 : i32, i32
  }
  func.func @transform_5(%arg0: i32) -> (i32, i32, i32) {
    %c0_i32 = arith.constant 0 : i32
    %c0_i32_0 = arith.constant 0 : i32
    %c0_i32_1 = arith.constant 0 : i32
    return %arg0, %c0_i32, %c0_i32_0 : i32, i32, i32
  }
}

</mosaic_0001>

<llo_original>
// kernel: tpu_custom_call.1
$region0: #{tpu_custom_call.1}
  #allocation0 [shape = 'u32[]', space=smem, size = 0x4, offset = 0x4, fixed_abs, tag = 'smem constant byte address 0x4 - core index']
  #allocation1 [shape = 'u32[144,128]{1,0:T(1,128)}', space=vmem, size = 0x12000, scoped, tag = 'internal scratch']
  #allocation2 [shape = 'f32[8,128]{1,0:T(8,128)}', space=vmem, size = 0x1000, scoped, tag = 'scratch operand']
  %s0 = inlined_call_operand.hbm [shape: f32[2,8,128], index: 0, kind: input, shape index: {}]
  %s1 = inlined_call_operand.hbm [shape: f32[2,8,128], index: 1, kind: input, shape index: {}]
  %s2 = inlined_call_operand.hbm [shape: f32[2,8,128], index: 2, kind: input, shape index: {}]
  %s3 = inlined_call_operand.hbm [shape: f32[128,128], index: 3, kind: input, shape index: {}]
  %s4 = inlined_call_operand.vmem [shape: f32[1,128], index: 4, kind: input, shape index: {}]
  %s5 = inlined_call_operand.hbm [shape: f32[2,8,128], index: 5, kind: output, shape index: {}]
  %s6 = sld [smem:[#allocation0]]
  $region69: #{tpu_custom_call.1} parent=0
    _
  %s8 = ssub.s32 1, %s6
  %s9 = scalar_select 0, %s8, %s6
  $region1: #{tpu_custom_call.1} parent=0
    #allocation3 [shape = 'u8[8192]{0}', space=vmem, size = 0x2000, scoped, tag = 'input window, operand 0']
    #allocation4 [shape = 's32[2]{0}', space=sflag, size = 0x8, scoped, tag = 'scoped memory for tpu_custom_call.1']
    #allocation5 [shape = 's32[2]{0}', space=sflag, size = 0x8, scoped, tag = 'scoped memory for tpu_custom_call.1']
    #allocation6 [shape = 'u8[8192]{0}', space=vmem, size = 0x2000, scoped, tag = 'input window, operand 1']
    #allocation7 [shape = 's32[2]{0}', space=sflag, size = 0x8, scoped, tag = 'scoped memory for tpu_custom_call.1']
    #allocation8 [shape = 'u8[8192]{0}', space=vmem, size = 0x2000, scoped, tag = 'input window, operand 2']
    #allocation9 [shape = 'u8[65536]{0}', space=vmem, size = 0x10000, scoped, tag = 'input window, operand 3, single buffered']
    #allocation10 [shape = 's32[1]{0}', space=sflag, size = 0x4, scoped, tag = 'scoped memory for tpu_custom_call.1']
    #allocation11 [shape = 'u8[8192]{0}', space=vmem, size = 0x2000, scoped, tag = 'output window, operand 0']
    %10 = vsyncpa [#allocation4], 0
    %s11 = scalar_lea.sflag [#allocation4], 1
    %12 = vsyncpa %s11, 0
    %13 = vsyncpa [#allocation7], 0
    %s14 = scalar_lea.sflag [#allocation7], 1
    %15 = vsyncpa %s14, 0
    %16 = vsyncpa [#allocation10], 0
    %17 = vsyncpa [#allocation5], 0
    %s18 = scalar_lea.sflag [#allocation5], 1
    %19 = vsyncpa %s18, 0
    loop: start=0, step=1, limit=4
    $region2: #{tpu_custom_call.1} parent=1 // loop_pre_header
      _
    $region3: #{tpu_custom_call.1} parent=1 // loop_header
      %s21 = sphi 0, %s25
      %p22 = scmp.ge.s32.totalorder %s21, 4
      %s31 = sphi 0, %s33
      %s34 = sphi 0, %s31
      %s35 = sphi 0, %s34
      %s51 = sphi 0, %s35
      %s57 = sphi 0, %s59
      %s60 = sphi 0, %s57
      %s61 = sphi 0, %s60
      %s77 = sphi 0, %s61
      %s83 = sphi 0, %s85
      %s86 = sphi 0, %s83
      %s87 = sphi 0, %s86
      %s103 = sphi 0, %s87
      %s107 = sphi 0, %s107
      %s109 = sphi 0, %s107
      %s110 = sphi 0, %s109
      %s124 = sphi 0, %s110
      %s128 = sphi 0, %s128
      %s130 = sphi 0, %s128
      %s131 = sphi 0, %s130
      %s145 = sphi 0, %s131
      %s151 = sphi 0, %s153
      %s154 = sphi 0, %s151
      %s155 = sphi 0, %s154
      %s171 = sphi 0, %s155
    $region4: #{tpu_custom_call.1} parent=1 // loop_header_branch
      %24 = sbr.rel (%p22) target = $region8
    $region5: #{tpu_custom_call.1} parent=1 // loop_body
      %s26 = ssub.s32 %s21, 1
      %s27 = ssub.s32 %s21, 2
      %s28 = sadd.s32 %s21, 1
      %s29 = ssub.s32 %s21, %s28
      %p30 = scmp.eq.s32.totalorder %s29, 0
      %s32 = sadd.s32 %s31, 1
      %s33 = scalar_select %p30, %s31, %s32
      %p36 = pneg %p30
      %p37 = scmp.eq.s32.totalorder %s21, 1
      %p38 = por %p36, %p37
      %p39 = scmp.ne.s32.totalorder %s31, %s34
      %p40 = scmp.eq.s32.totalorder %s21, 0
      %p41 = por %p39, %p40
      %p42 = scmp.ne.s32.totalorder %s31, %s34
      %p43 = scmp.eq.s32.totalorder %s26, 1
      %p44 = por %p42, %p43
      %p45 = scmp.ne.s32.totalorder %s34, %s35
      %p46 = scmp.eq.s32.totalorder %s26, 0
      %p47 = por %p45, %p46
      %p48 = scmp.ne.s32.totalorder %s34, %s35
      %p49 = scmp.eq.s32.totalorder %s27, 1
      %p50 = por %p48, %p49
      %p52 = scmp.ne.s32.totalorder %s35, %s51
      %p53 = scmp.eq.s32.totalorder %s27, 0
      %p54 = por %p52, %p53
      %s55 = ssub.s32 %s21, %s28
      %p56 = scmp.eq.s32.totalorder %s55, 0
      %s58 = sadd.s32 %s57, 1
      %s59 = scalar_select %p56, %s57, %s58
      %p62 = pneg %p56
      %p63 = scmp.eq.s32.totalorder %s21, 1
      %p64 = por %p62, %p63
      %p65 = scmp.ne.s32.totalorder %s57, %s60
      %p66 = scmp.eq.s32.totalorder %s21, 0
      %p67 = por %p65, %p66
      %p68 = scmp.ne.s32.totalorder %s57, %s60
      %p69 = scmp.eq.s32.totalorder %s26, 1
      %p70 = por %p68, %p69
      %p71 = scmp.ne.s32.totalorder %s60, %s61
      %p72 = scmp.eq.s32.totalorder %s26, 0
      %p73 = por %p71, %p72
      %p74 = scmp.ne.s32.totalorder %s60, %s61
      %p75 = scmp.eq.s32.totalorder %s27, 1
      %p76 = por %p74, %p75
      %p78 = scmp.ne.s32.totalorder %s61, %s77
      %p79 = scmp.eq.s32.totalorder %s27, 0
      %p80 = por %p78, %p79
      %s81 = ssub.s32 %s21, %s28
      %p82 = scmp.eq.s32.totalorder %s81, 0
      %s84 = sadd.s32 %s83, 1
      %s85 = scalar_select %p82, %s83, %s84
      %p88 = pneg %p82
      %p89 = scmp.eq.s32.totalorder %s21, 1
      %p90 = por %p88, %p89
      %p91 = scmp.ne.s32.totalorder %s83, %s86
      %p92 = scmp.eq.s32.totalorder %s21, 0
      %p93 = por %p91, %p92
      %p94 = scmp.ne.s32.totalorder %s83, %s86
      %p95 = scmp.eq.s32.totalorder %s26, 1
      %p96 = por %p94, %p95
      %p97 = scmp.ne.s32.totalorder %s86, %s87
      %p98 = scmp.eq.s32.totalorder %s26, 0
      %p99 = por %p97, %p98
      %p100 = scmp.ne.s32.totalorder %s86, %s87
      %p101 = scmp.eq.s32.totalorder %s27, 1
      %p102 = por %p100, %p101
      %p104 = scmp.ne.s32.totalorder %s87, %s103
      %p105 = scmp.eq.s32.totalorder %s27, 0
      %p106 = por %p104, %p105
      %s108 = sadd.s32 %s107, 1
      %p111 = scmp.eq.s32.totalorder %s21, 1
      %p112 = scmp.ne.s32.totalorder %s107, %s109
      %p113 = scmp.eq.s32.totalorder %s21, 0
      %p114 = por %p112, %p113
      %p115 = scmp.ne.s32.totalorder %s107, %s109
      %p116 = scmp.eq.s32.totalorder %s26, 1
      %p117 = por %p115, %p116
      %p118 = scmp.ne.s32.totalorder %s109, %s110
      %p119 = scmp.eq.s32.totalorder %s26, 0
      %p120 = por %p118, %p119
      %p121 = scmp.ne.s32.totalorder %s109, %s110
      %p122 = scmp.eq.s32.totalorder %s27, 1
      %p123 = por %p121, %p122
      %p125 = scmp.ne.s32.totalorder %s110, %s124
      %p126 = scmp.eq.s32.totalorder %s27, 0
      %p127 = por %p125, %p126
      %s129 = sadd.s32 %s128, 1
      %p132 = scmp.eq.s32.totalorder %s21, 1
      %p133 = scmp.ne.s32.totalorder %s128, %s130
      %p134 = scmp.eq.s32.totalorder %s21, 0
      %p135 = por %p133, %p134
      %p136 = scmp.ne.s32.totalorder %s128, %s130
      %p137 = scmp.eq.s32.totalorder %s26, 1
      %p138 = por %p136, %p137
      %p139 = scmp.ne.s32.totalorder %s130, %s131
      %p140 = scmp.eq.s32.totalorder %s26, 0
      %p141 = por %p139, %p140
      %p142 = scmp.ne.s32.totalorder %s130, %s131
      %p143 = scmp.eq.s32.totalorder %s27, 1
      %p144 = por %p142, %p143
      %p146 = scmp.ne.s32.totalorder %s131, %s145
      %p147 = scmp.eq.s32.totalorder %s27, 0
      %p148 = por %p146, %p147
      %s149 = ssub.s32 %s21, %s28
      %p150 = scmp.eq.s32.totalorder %s149, 0
      %s152 = sadd.s32 %s151, 1
      %s153 = scalar_select %p150, %s151, %s152
      %p156 = pneg %p150
      %p157 = scmp.eq.s32.totalorder %s21, 1
      %p158 = por %p156, %p157
      %p159 = scmp.ne.s32.totalorder %s151, %s154
      %p160 = scmp.eq.s32.totalorder %s21, 0
      %p161 = por %p159, %p160
      %p162 = scmp.ne.s32.totalorder %s151, %s154
      %p163 = scmp.eq.s32.totalorder %s26, 1
      %p164 = por %p162, %p163
      %p165 = scmp.ne.s32.totalorder %s154, %s155
      %p166 = scmp.eq.s32.totalorder %s26, 0
      %p167 = por %p165, %p166
      %p168 = scmp.ne.s32.totalorder %s154, %s155
      %p169 = scmp.eq.s32.totalorder %s27, 1
      %p170 = por %p168, %p169
      %p172 = scmp.ne.s32.totalorder %s155, %s171
      %p173 = scmp.eq.s32.totalorder %s27, 0
      %p174 = por %p172, %p173
      %p175 = scmp.le.s32.totalorder 1, %s21
      %p176 = scmp.lt.s32.totalorder %s21, 3
      %p177 = pnand %p175, %p176
      %p178 = pneg %p177
      // Predicated region
      $region9: #{tpu_custom_call.1} parent=5 // pred_check
        _
      $region10: #{tpu_custom_call.1} parent=5 // pred_check_branch
        %180 = sbr.rel (%p177) target = $region12
      $region11: #{tpu_custom_call.1} parent=5 // pred_region
        %s181 = ssub.s32 %s21, 1
        // Predicated region
        $region13: #{tpu_custom_call.1} parent=11 // pred_check
          %p182 = pneg %p120
        $region14: #{tpu_custom_call.1} parent=11 // pred_check_branch
          %184 = sbr.rel (%p182) target = $region16
        $region15: #{tpu_custom_call.1} parent=11 // pred_region
          %s186 = ssub.s32 2048, 2048
          %187 = vsyncadd [#allocation10], %s186
          %s188 = sshll.u32 [#allocation9], 4
          %s189 = int_to_ptr.vmem [resolvable:$true] %s188
          %194 = dma.hbm_to_vmem [thread:$0]  %s3, 2048, %s189, [#allocation10], 128, 128, 8
        $region16: #{tpu_custom_call.1} parent=11 // pred_fallthru
          _
        // Predicated region
        $region17: #{tpu_custom_call.1} parent=11 // pred_check
          %p195 = pneg %p141
        $region18: #{tpu_custom_call.1} parent=11 // pred_check_branch
          %197 = sbr.rel (%p195) target = $region20
        $region19: #{tpu_custom_call.1} parent=11 // pred_region
          _
        $region20: #{tpu_custom_call.1} parent=11 // pred_fallthru
          _
      $region12: #{tpu_custom_call.1} parent=5 // pred_fallthru
        _
      %p198 = scmp.lt.s32.totalorder %s21, 2
      // Predicated region
      $region21: #{tpu_custom_call.1} parent=5 // pred_check
        %p199 = pneg %p198
      $region22: #{tpu_custom_call.1} parent=5 // pred_check_branch
        %201 = sbr.rel (%p199) target = $region24
      $region23: #{tpu_custom_call.1} parent=5 // pred_region
        // Predicated region
        $region25: #{tpu_custom_call.1} parent=23 // pred_check
          %p202 = pneg %p41
        $region26: #{tpu_custom_call.1} parent=23 // pred_check_branch
          %204 = sbr.rel (%p202) target = $region28
        $region27: #{tpu_custom_call.1} parent=23 // pred_region
          %s205 = sand.u32 %s31, 1
          %s206 = scalar_lea.sflag [#allocation4], %s205
          %s207 = sand.u32 %s31, 1
          %s208 = smul.addr %s207, 8
          %s209 = scalar_lea.vmem [#allocation3], %s208
          %s211 = ssub.s32 128, 128
          %212 = vsyncadd %s206, %s211
          %s213 = smul.addr %s21, 128
          %s214 = scalar_lea.hbm %s0, %s213
          %s216 = sshll.u32 %s209, 4
          %s217 = int_to_ptr.vmem [resolvable:$true] %s216
          %219 = dma.hbm_to_vmem [thread:$0]  %s214, 128, %s217, %s206
        $region28: #{tpu_custom_call.1} parent=23 // pred_fallthru
          _
        // Predicated region
        $region29: #{tpu_custom_call.1} parent=23 // pred_check
          %p220 = pneg %p67
        $region30: #{tpu_custom_call.1} parent=23 // pred_check_branch
          %222 = sbr.rel (%p220) target = $region32
        $region31: #{tpu_custom_call.1} parent=23 // pred_region
          %s223 = sand.u32 %s21, 1
          %s224 = scalar_lea.sflag [#allocation7], %s223
          %s225 = sand.u32 %s57, 1
          %s226 = smul.addr %s225, 8
          %s227 = scalar_lea.vmem [#allocation6], %s226
          %s229 = ssub.s32 128, 128
          %230 = vsyncadd %s224, %s229
          %s231 = smul.addr %s21, 128
          %s232 = scalar_lea.hbm %s1, %s231
          %s234 = sshll.u32 %s227, 4
          %s235 = int_to_ptr.vmem [resolvable:$true] %s234
          %237 = dma.hbm_to_vmem [thread:$0]  %s232, 128, %s235, %s224
        $region32: #{tpu_custom_call.1} parent=23 // pred_fallthru
          _
        // Predicated region
        $region33: #{tpu_custom_call.1} parent=23 // pred_check
          %p238 = pneg %p93
        $region34: #{tpu_custom_call.1} parent=23 // pred_check_branch
          %240 = sbr.rel (%p238) target = $region36
        $region35: #{tpu_custom_call.1} parent=23 // pred_region
          %s241 = sand.u32 %s21, 1
          %s242 = scalar_lea.sflag [#allocation7], %s241
          %s243 = sand.u32 %s83, 1
          %s244 = smul.addr %s243, 8
          %s245 = scalar_lea.vmem [#allocation8], %s244
          %s247 = ssub.s32 128, 128
          %248 = vsyncadd %s242, %s247
          %s249 = smul.addr %s21, 128
          %s250 = scalar_lea.hbm %s2, %s249
          %s252 = sshll.u32 %s245, 4
          %s253 = int_to_ptr.vmem [resolvable:$true] %s252
          %255 = dma.hbm_to_vmem [thread:$0]  %s250, 128, %s253, %s242
        $region36: #{tpu_custom_call.1} parent=23 // pred_fallthru
          _
      $region24: #{tpu_custom_call.1} parent=5 // pred_fallthru
        _
      %p256 = scmp.le.s32.totalorder 1, %s21
      %p257 = scmp.lt.s32.totalorder %s21, 3
      %p258 = pnand %p256, %p257
      %p259 = pneg %p258
      // Predicated region
      $region37: #{tpu_custom_call.1} parent=5 // pred_check
        _
      $region38: #{tpu_custom_call.1} parent=5 // pred_check_branch
        %261 = sbr.rel (%p258) target = $region40
      $region39: #{tpu_custom_call.1} parent=5 // pred_region
        %s262 = ssub.s32 %s21, 1
        %s263 = sand.u32 %s34, 1
        %s264 = scalar_lea.sflag [#allocation4], %s263
        %s265 = sand.u32 %s34, 1
        %s266 = smul.addr %s265, 8
        %s267 = scalar_lea.vmem [#allocation3], %s266
        // Predicated region
        $region41: #{tpu_custom_call.1} parent=39 // pred_check
          %p268 = pneg %p47
        $region42: #{tpu_custom_call.1} parent=39 // pred_check_branch
          %270 = sbr.rel (%p268) target = $region44
        $region43: #{tpu_custom_call.1} parent=39 // pred_region
          %271 = dma.done %s264, 128
        $region44: #{tpu_custom_call.1} parent=39 // pred_fallthru
          _
        %s272 = sand.u32 %s26, 1
        %s273 = scalar_lea.sflag [#allocation7], %s272
        %s274 = sand.u32 %s60, 1
        %s275 = smul.addr %s274, 8
        %s276 = scalar_lea.vmem [#allocation6], %s275
        // Predicated region
        $region45: #{tpu_custom_call.1} parent=39 // pred_check
          %p277 = pneg %p73
        $region46: #{tpu_custom_call.1} parent=39 // pred_check_branch
          %279 = sbr.rel (%p277) target = $region48
        $region47: #{tpu_custom_call.1} parent=39 // pred_region
          %280 = dma.done %s273, 128
        $region48: #{tpu_custom_call.1} parent=39 // pred_fallthru
          _
        %s281 = sand.u32 %s26, 1
        %s282 = scalar_lea.sflag [#allocation7], %s281
        %s283 = sand.u32 %s86, 1
        %s284 = smul.addr %s283, 8
        %s285 = scalar_lea.vmem [#allocation8], %s284
        // Predicated region
        $region49: #{tpu_custom_call.1} parent=39 // pred_check
          %p286 = pneg %p99
        $region50: #{tpu_custom_call.1} parent=39 // pred_check_branch
          %288 = sbr.rel (%p286) target = $region52
        $region51: #{tpu_custom_call.1} parent=39 // pred_region
          %289 = dma.done %s282, 128
        $region52: #{tpu_custom_call.1} parent=39 // pred_fallthru
          _
        // Predicated region
        $region53: #{tpu_custom_call.1} parent=39 // pred_check
          %p290 = pneg %p120
        $region54: #{tpu_custom_call.1} parent=39 // pred_check_branch
          %292 = sbr.rel (%p290) target = $region56
        $region55: #{tpu_custom_call.1} parent=39 // pred_region
          %293 = dma.done [#allocation10], 2048
        $region56: #{tpu_custom_call.1} parent=39 // pred_fallthru
          _
        %s294 = sand.u32 %s34, 1
        %s295 = scalar_lea.sflag [#allocation4], %s294
        %s296 = sand.u32 %s34, 1
        %s297 = smul.addr %s296, 8
        %s298 = scalar_lea.vmem [#allocation3], %s297
        %p299 = pneg %p47
        %p300 = pneg %p44
        %s301 = sand.u32 %s26, 1
        %s302 = scalar_lea.sflag [#allocation7], %s301
        %s303 = sand.u32 %s60, 1
        %s304 = smul.addr %s303, 8
        %s305 = scalar_lea.vmem [#allocation6], %s304
        %p306 = pneg %p73
        %p307 = pneg %p70
        %s308 = sand.u32 %s26, 1
        %s309 = scalar_lea.sflag [#allocation7], %s308
        %s310 = sand.u32 %s86, 1
        %s311 = smul.addr %s310, 8
        %s312 = scalar_lea.vmem [#allocation8], %s311
        %p313 = pneg %p99
        %p314 = pneg %p96
        %p315 = pneg %p120
        %p316 = pneg %p117
        %p317 = pneg %p141
        %p318 = pneg %p138
        %p319 = pneg %p167
        %p320 = pneg %p164
        %s321 = sand.u32 %s154, 1
        %s322 = scalar_lea.sflag [#allocation5], %s321
        %s323 = sand.u32 %s154, 1
        %s324 = smul.addr %s323, 8
        %s325 = scalar_lea.vmem [#allocation11], %s324
        %v326 = vld [vmem:[%s267] sm:$0xff]
        %v327 = vld [vmem:[%s276] sm:$0xff]
        %v328 = vld [vmem:[%s285] sm:$0xff]
        %v329 = vmul.f32 %v326, 0.17677669
        %vm330 = vcmask 261120
        %v332 = vsel %vm330, %v329, 0
        %v335 = vsel %vm330, %v327, 0
        %337 = vmatprep.subr.mxu0 0.0
        %338 = vmatpush1.xpose.msra.mxu0 %v335
        %339 = vmatprep.subr.mxu0 0.0
        %340 = vmatpush1.xpose.msra.mxu0 0.0
        %341 = vmatprep.subr.mxu0 0.0
        %342 = vmatpush1.xpose.msra.mxu0 0.0
        %343 = vmatprep.subr.mxu0 0.0
        %344 = vmatpush1.xpose.msra.mxu0 0.0
        %345 = vmatprep.subr.mxu0 0.0
        %346 = vmatpush1.xpose.msra.mxu0 0.0
        %347 = vmatprep.subr.mxu0 0.0
        %348 = vmatpush1.xpose.msra.mxu0 0.0
        %349 = vmatprep.subr.mxu0 0.0
        %350 = vmatpush1.xpose.msra.mxu0 0.0
        %351 = vmatprep.subr.mxu0 0.0
        %352 = vmatpush1.xpose.msra.mxu0 0.0
        %353 = vmatprep.subr.mxu0 0.0
        %354 = vmatpush1.xpose.msra.mxu0 0.0
        %355 = vmatprep.subr.mxu0 0.0
        %356 = vmatpush1.xpose.msra.mxu0 0.0
        %357 = vmatprep.subr.mxu0 0.0
        %358 = vmatpush1.xpose.msra.mxu0 0.0
        %359 = vmatprep.subr.mxu0 0.0
        %360 = vmatpush1.xpose.msra.mxu0 0.0
        %361 = vmatprep.subr.mxu0 0.0
        %362 = vmatpush1.xpose.msra.mxu0 0.0
        %363 = vmatprep.subr.mxu0 0.0
        %364 = vmatpush1.xpose.msra.mxu0 0.0
        %365 = vmatprep.subr.mxu0 0.0
        %366 = vmatpush1.xpose.msra.mxu0 0.0
        %367 = vmatprep.subr.mxu0 0.0
        %368 = vmatpush1.xpose.msra.mxu0 0.0
        %369 = vmatprep.subr.mxu0 0.0
        %370 = vmatpush1.xpose.msra.mxu0 0.0
        %371 = vmatprep.subr.mxu0 0.0
        %372 = vmatpush1.xpose.msra.mxu0 0.0
        %373 = vmatprep.subr.mxu0 0.0
        %374 = vmatpush1.xpose.msra.mxu0 0.0
        %375 = vmatprep.subr.mxu0 0.0
        %376 = vmatpush1.xpose.msra.mxu0 0.0
        %377 = vmatprep.subr.mxu0 0.0
        %378 = vmatpush1.xpose.msra.mxu0 0.0
        %379 = vmatprep.subr.mxu0 0.0
        %380 = vmatpush1.xpose.msra.mxu0 0.0
        %381 = vmatprep.subr.mxu0 0.0
        %382 = vmatpush1.xpose.msra.mxu0 0.0
        %383 = vmatprep.subr.mxu0 0.0
        %384 = vmatpush1.xpose.msra.mxu0 0.0
        %385 = vmatprep.subr.mxu0 0.0
        %386 = vmatpush1.xpose.msra.mxu0 0.0
        %387 = vmatprep.subr.mxu0 0.0
        %388 = vmatpush1.xpose.msra.mxu0 0.0
        %389 = vmatprep.subr.mxu0 0.0
        %390 = vmatpush1.xpose.msra.mxu0 0.0
        %391 = vmatprep.subr.mxu0 0.0
        %392 = vmatpush1.xpose.msra.mxu0 0.0
        %393 = vmatprep.subr.mxu0 0.0
        %394 = vmatpush1.xpose.msra.mxu0 0.0
        %395 = vmatprep.subr.mxu0 0.0
        %396 = vmatpush1.xpose.msra.mxu0 0.0
        %397 = vmatprep.subr.mxu0 0.0
        %398 = vmatpush1.xpose.msra.mxu0 0.0
        %399 = vmatprep.subr.mxu0 0.0
        %400 = vmatpush1.xpose.msra.mxu0 0.0
        %401 = vmatprep.mubr.f32.mxu0 0.0
        %402 = vmatmul.mubr.f32.gmra.mrb[0].mxu0 %v332
        %v403 = vpop.f32.mrb[0].mxu0
        %v404 = vadd.f32 0.0, %v403
        %v405 = vpop.f32.mrb[0].mxu0
        %406 = vdwg.mxu0
        %vm407 = vcmask 64512
        %v408 = vsel %vm407, %v404, -inf
        %409 = vmax.xlane.f32.xlu0 %v408
        %v410 = vpop.xlane.xlu0 %409
        %v411 = vsub.f32 %v404, %v410
        %v412 = vmul.f32 %v411, 1.442695
        %v413 = vpow.pop %v412
        %v414 = vsel %vm407, %v413, 0.0
        %415 = vadd.xlane.f32.xlu0 %v414
        %v416 = vpop.xlane.xlu0 %415
        %v418 = vsel %vm407, %v413, 0
        %420 = vmatprep.subr.mxu0 0.0
        %421 = vmatpush1.msra.mxu0 %v328
        %422 = vmatprep.subr.mxu0 0.0
        %423 = vmatpush1.msra.mxu0 0.0
        %424 = vmatprep.subr.mxu0 0.0
        %425 = vmatpush1.msra.mxu0 0.0
        %426 = vmatprep.subr.mxu0 0.0
        %427 = vmatpush1.msra.mxu0 0.0
        %428 = vmatprep.subr.mxu0 0.0
        %429 = vmatpush1.msra.mxu0 0.0
        %430 = vmatprep.subr.mxu0 0.0
        %431 = vmatpush1.msra.mxu0 0.0
        %432 = vmatprep.subr.mxu0 0.0
        %433 = vmatpush1.msra.mxu0 0.0
        %434 = vmatprep.subr.mxu0 0.0
        %435 = vmatpush1.msra.mxu0 0.0
        %436 = vmatprep.subr.mxu0 0.0
        %437 = vmatpush1.msra.mxu0 0.0
        %438 = vmatprep.subr.mxu0 0.0
        %439 = vmatpush1.msra.mxu0 0.0
        %440 = vmatprep.subr.mxu0 0.0
        %441 = vmatpush1.msra.mxu0 0.0
        %442 = vmatprep.subr.mxu0 0.0
        %443 = vmatpush1.msra.mxu0 0.0
        %444 = vmatprep.subr.mxu0 0.0
        %445 = vmatpush1.msra.mxu0 0.0
        %446 = vmatprep.subr.mxu0 0.0
        %447 = vmatpush1.msra.mxu0 0.0
        %448 = vmatprep.subr.mxu0 0.0
        %449 = vmatpush1.msra.mxu0 0.0
        %450 = vmatprep.subr.mxu0 0.0
        %451 = vmatpush1.msra.mxu0 0.0
        %452 = vmatprep.subr.mxu0 0.0
        %453 = vmatpush1.msra.mxu0 0.0
        %454 = vmatprep.subr.mxu0 0.0
        %455 = vmatpush1.msra.mxu0 0.0
        %456 = vmatprep.subr.mxu0 0.0
        %457 = vmatpush1.msra.mxu0 0.0
        %458 = vmatprep.subr.mxu0 0.0
        %459 = vmatpush1.msra.mxu0 0.0
        %460 = vmatprep.subr.mxu0 0.0
        %461 = vmatpush1.msra.mxu0 0.0
        %462 = vmatprep.subr.mxu0 0.0
        %463 = vmatpush1.msra.mxu0 0.0
        %464 = vmatprep.subr.mxu0 0.0
        %465 = vmatpush1.msra.mxu0 0.0
        %466 = vmatprep.subr.mxu0 0.0
        %467 = vmatpush1.msra.mxu0 0.0
        %468 = vmatprep.subr.mxu0 0.0
        %469 = vmatpush1.msra.mxu0 0.0
        %470 = vmatprep.subr.mxu0 0.0
        %471 = vmatpush1.msra.mxu0 0.0
        %472 = vmatprep.subr.mxu0 0.0
        %473 = vmatpush1.msra.mxu0 0.0
        %474 = vmatprep.subr.mxu0 0.0
        %475 = vmatpush1.msra.mxu0 0.0
        %476 = vmatprep.subr.mxu0 0.0
        %477 = vmatpush1.msra.mxu0 0.0
        %478 = vmatprep.subr.mxu0 0.0
        %479 = vmatpush1.msra.mxu0 0.0
        %480 = vmatprep.subr.mxu0 0.0
        %481 = vmatpush1.msra.mxu0 0.0
        %482 = vmatprep.subr.mxu0 0.0
        %483 = vmatpush1.msra.mxu0 0.0
        %484 = vmatprep.mubr.f32.mxu0 0.0
        %485 = vmatmul.mubr.f32.gmra.mrb[0].mxu0 %v418
        %v486 = vpop.f32.mrb[0].mxu0
        %v487 = vadd.f32 0.0, %v486
        %v488 = vpop.f32.mrb[0].mxu0
        %489 = vdwg.mxu0
        %v490 = vrcp.pop %v416
        %v491 = vmul.f32 1.0, %v490
        %v492 = vmul.f32 %v487, %v491
        %493 = vst.msk [vmem:[#allocation2] sm:$0xff] %vm330, %v492
        %494 = vrot.lane.b32.xlu0 %v329, 96
        %v495 = vpop.permute.xlu0 %494
        %496 = vrot.lane.b32.xlu0 %v327, 96
        %v497 = vpop.permute.xlu0 %496
        %v498 = vsel %vm330, %v495, 0
        %v500 = vsel %vm330, %v497, 0
        %502 = vmatprep.subr.mxu0 0.0
        %503 = vmatpush1.xpose.msra.mxu0 %v500
        %504 = vmatprep.subr.mxu0 0.0
        %505 = vmatpush1.xpose.msra.mxu0 0.0
        %506 = vmatprep.subr.mxu0 0.0
        %507 = vmatpush1.xpose.msra.mxu0 0.0
        %508 = vmatprep.subr.mxu0 0.0
        %509 = vmatpush1.xpose.msra.mxu0 0.0
        %510 = vmatprep.subr.mxu0 0.0
        %511 = vmatpush1.xpose.msra.mxu0 0.0
        %512 = vmatprep.subr.mxu0 0.0
        %513 = vmatpush1.xpose.msra.mxu0 0.0
        %514 = vmatprep.subr.mxu0 0.0
        %515 = vmatpush1.xpose.msra.mxu0 0.0
        %516 = vmatprep.subr.mxu0 0.0
        %517 = vmatpush1.xpose.msra.mxu0 0.0
        %518 = vmatprep.subr.mxu0 0.0
        %519 = vmatpush1.xpose.msra.mxu0 0.0
        %520 = vmatprep.subr.mxu0 0.0
        %521 = vmatpush1.xpose.msra.mxu0 0.0
        %522 = vmatprep.subr.mxu0 0.0
        %523 = vmatpush1.xpose.msra.mxu0 0.0
        %524 = vmatprep.subr.mxu0 0.0
        %525 = vmatpush1.xpose.msra.mxu0 0.0
        %526 = vmatprep.subr.mxu0 0.0
        %527 = vmatpush1.xpose.msra.mxu0 0.0
        %528 = vmatprep.subr.mxu0 0.0
        %529 = vmatpush1.xpose.msra.mxu0 0.0
        %530 = vmatprep.subr.mxu0 0.0
        %531 = vmatpush1.xpose.msra.mxu0 0.0
        %532 = vmatprep.subr.mxu0 0.0
        %533 = vmatpush1.xpose.msra.mxu0 0.0
        %534 = vmatprep.subr.mxu0 0.0
        %535 = vmatpush1.xpose.msra.mxu0 0.0
        %536 = vmatprep.subr.mxu0 0.0
        %537 = vmatpush1.xpose.msra.mxu0 0.0
        %538 = vmatprep.subr.mxu0 0.0
        %539 = vmatpush1.xpose.msra.mxu0 0.0
        %540 = vmatprep.subr.mxu0 0.0
        %541 = vmatpush1.xpose.msra.mxu0 0.0
        %542 = vmatprep.subr.mxu0 0.0
        %543 = vmatpush1.xpose.msra.mxu0 0.0
        %544 = vmatprep.subr.mxu0 0.0
        %545 = vmatpush1.xpose.msra.mxu0 0.0
        %546 = vmatprep.subr.mxu0 0.0
        %547 = vmatpush1.xpose.msra.mxu0 0.0
        %548 = vmatprep.subr.mxu0 0.0
        %549 = vmatpush1.xpose.msra.mxu0 0.0
        %550 = vmatprep.subr.mxu0 0.0
        %551 = vmatpush1.xpose.msra.mxu0 0.0
        %552 = vmatprep.subr.mxu0 0.0
        %553 = vmatpush1.xpose.msra.mxu0 0.0
        %554 = vmatprep.subr.mxu0 0.0
        %555 = vmatpush1.xpose.msra.mxu0 0.0
        %556 = vmatprep.subr.mxu0 0.0
        %557 = vmatpush1.xpose.msra.mxu0 0.0
        %558 = vmatprep.subr.mxu0 0.0
        %559 = vmatpush1.xpose.msra.mxu0 0.0
        %560 = vmatprep.subr.mxu0 0.0
        %561 = vmatpush1.xpose.msra.mxu0 0.0
        %562 = vmatprep.subr.mxu0 0.0
        %563 = vmatpush1.xpose.msra.mxu0 0.0
        %564 = vmatprep.subr.mxu0 0.0
        %565 = vmatpush1.xpose.msra.mxu0 0.0
        %566 = vmatprep.mubr.f32.mxu0 0.0
        %567 = vmatmul.mubr.f32.gmra.mrb[0].mxu0 %v498
        %v568 = vpop.f32.mrb[0].mxu0
        %v569 = vadd.f32 0.0, %v568
        %v570 = vpop.f32.mrb[0].mxu0
        %571 = vdwg.mxu0
        %v572 = vsel %vm407, %v569, -inf
        %573 = vmax.xlane.f32.xlu0 %v572
        %v574 = vpop.xlane.xlu0 %573
        %v575 = vsub.f32 %v569, %v574
        %v576 = vmul.f32 %v575, 1.442695
        %v577 = vpow.pop %v576
        %v578 = vsel %vm407, %v577, 0.0
        %579 = vadd.xlane.f32.xlu0 %v578
        %v580 = vpop.xlane.xlu0 %579
        %582 = vrot.lane.b32.xlu0 %v328, 96
        %v583 = vpop.permute.xlu0 %582
        %v586 = vsel %vm407, %v577, 0
        %588 = vmatprep.subr.mxu0 0.0
        %589 = vmatpush1.msra.mxu0 %v583
        %590 = vmatprep.subr.mxu0 0.0
        %591 = vmatpush1.msra.mxu0 0.0
        %592 = vmatprep.subr.mxu0 0.0
        %593 = vmatpush1.msra.mxu0 0.0
        %594 = vmatprep.subr.mxu0 0.0
        %595 = vmatpush1.msra.mxu0 0.0
        %596 = vmatprep.subr.mxu0 0.0
        %597 = vmatpush1.msra.mxu0 0.0
        %598 = vmatprep.subr.mxu0 0.0
        %599 = vmatpush1.msra.mxu0 0.0
        %600 = vmatprep.subr.mxu0 0.0
        %601 = vmatpush1.msra.mxu0 0.0
        %602 = vmatprep.subr.mxu0 0.0
        %603 = vmatpush1.msra.mxu0 0.0
        %604 = vmatprep.subr.mxu0 0.0
        %605 = vmatpush1.msra.mxu0 0.0
        %606 = vmatprep.subr.mxu0 0.0
        %607 = vmatpush1.msra.mxu0 0.0
        %608 = vmatprep.subr.mxu0 0.0
        %609 = vmatpush1.msra.mxu0 0.0
        %610 = vmatprep.subr.mxu0 0.0
        %611 = vmatpush1.msra.mxu0 0.0
        %612 = vmatprep.subr.mxu0 0.0
        %613 = vmatpush1.msra.mxu0 0.0
        %614 = vmatprep.subr.mxu0 0.0
        %615 = vmatpush1.msra.mxu0 0.0
        %616 = vmatprep.subr.mxu0 0.0
        %617 = vmatpush1.msra.mxu0 0.0
        %618 = vmatprep.subr.mxu0 0.0
        %619 = vmatpush1.msra.mxu0 0.0
        %620 = vmatprep.subr.mxu0 0.0
        %621 = vmatpush1.msra.mxu0 0.0
        %622 = vmatprep.subr.mxu0 0.0
        %623 = vmatpush1.msra.mxu0 0.0
        %624 = vmatprep.subr.mxu0 0.0
        %625 = vmatpush1.msra.mxu0 0.0
        %626 = vmatprep.subr.mxu0 0.0
        %627 = vmatpush1.msra.mxu0 0.0
        %628 = vmatprep.subr.mxu0 0.0
        %629 = vmatpush1.msra.mxu0 0.0
        %630 = vmatprep.subr.mxu0 0.0
        %631 = vmatpush1.msra.mxu0 0.0
        %632 = vmatprep.subr.mxu0 0.0
        %633 = vmatpush1.msra.mxu0 0.0
        %634 = vmatprep.subr.mxu0 0.0
        %635 = vmatpush1.msra.mxu0 0.0
        %636 = vmatprep.subr.mxu0 0.0
        %637 = vmatpush1.msra.mxu0 0.0
        %638 = vmatprep.subr.mxu0 0.0
        %639 = vmatpush1.msra.mxu0 0.0
        %640 = vmatprep.subr.mxu0 0.0
        %641 = vmatpush1.msra.mxu0 0.0
        %642 = vmatprep.subr.mxu0 0.0
        %643 = vmatpush1.msra.mxu0 0.0
        %644 = vmatprep.subr.mxu0 0.0
        %645 = vmatpush1.msra.mxu0 0.0
        %646 = vmatprep.subr.mxu0 0.0
        %647 = vmatpush1.msra.mxu0 0.0
        %648 = vmatprep.subr.mxu0 0.0
        %649 = vmatpush1.msra.mxu0 0.0
        %650 = vmatprep.subr.mxu0 0.0
        %651 = vmatpush1.msra.mxu0 0.0
        %652 = vmatprep.mubr.f32.mxu0 0.0
        %653 = vmatmul.mubr.f32.gmra.mrb[0].mxu0 %v586
        %v654 = vpop.f32.mrb[0].mxu0
        %v655 = vadd.f32 0.0, %v654
        %v656 = vpop.f32.mrb[0].mxu0
        %657 = vdwg.mxu0
        %v658 = vrcp.pop %v580
        %v659 = vmul.f32 1.0, %v658
        %v660 = vmul.f32 %v655, %v659
        %662 = vrot.lane.b32.xlu0 %v660, 32
        %v663 = vpop.permute.xlu0 %662
        %vm665 = vcmask 523520
        %666 = vst.msk [vmem:[#allocation2] sm:$0xff] %vm665, %v663
        %667 = vrot.lane.b32.xlu0 %v329, 64
        %v668 = vpop.permute.xlu0 %667
        %669 = vrot.lane.b32.xlu0 %v327, 64
        %v670 = vpop.permute.xlu0 %669
        %v671 = vsel %vm330, %v668, 0
        %v673 = vsel %vm330, %v670, 0
        %675 = vmatprep.subr.mxu0 0.0
        %676 = vmatpush1.xpose.msra.mxu0 %v673
        %677 = vmatprep.subr.mxu0 0.0
        %678 = vmatpush1.xpose.msra.mxu0 0.0
        %679 = vmatprep.subr.mxu0 0.0
        %680 = vmatpush1.xpose.msra.mxu0 0.0
        %681 = vmatprep.subr.mxu0 0.0
        %682 = vmatpush1.xpose.msra.mxu0 0.0
        %683 = vmatprep.subr.mxu0 0.0
        %684 = vmatpush1.xpose.msra.mxu0 0.0
        %685 = vmatprep.subr.mxu0 0.0
        %686 = vmatpush1.xpose.msra.mxu0 0.0
        %687 = vmatprep.subr.mxu0 0.0
        %688 = vmatpush1.xpose.msra.mxu0 0.0
        %689 = vmatprep.subr.mxu0 0.0
        %690 = vmatpush1.xpose.msra.mxu0 0.0
        %691 = vmatprep.subr.mxu0 0.0
        %692 = vmatpush1.xpose.msra.mxu0 0.0
        %693 = vmatprep.subr.mxu0 0.0
        %694 = vmatpush1.xpose.msra.mxu0 0.0
        %695 = vmatprep.subr.mxu0 0.0
        %696 = vmatpush1.xpose.msra.mxu0 0.0
        %697 = vmatprep.subr.mxu0 0.0
        %698 = vmatpush1.xpose.msra.mxu0 0.0
        %699 = vmatprep.subr.mxu0 0.0
        %700 = vmatpush1.xpose.msra.mxu0 0.0
        %701 = vmatprep.subr.mxu0 0.0
        %702 = vmatpush1.xpose.msra.mxu0 0.0
        %703 = vmatprep.subr.mxu0 0.0
        %704 = vmatpush1.xpose.msra.mxu0 0.0
        %705 = vmatprep.subr.mxu0 0.0
        %706 = vmatpush1.xpose.msra.mxu0 0.0
        %707 = vmatprep.subr.mxu0 0.0
        %708 = vmatpush1.xpose.msra.mxu0 0.0
        %709 = vmatprep.subr.mxu0 0.0
        %710 = vmatpush1.xpose.msra.mxu0 0.0
        %711 = vmatprep.subr.mxu0 0.0
        %712 = vmatpush1.xpose.msra.mxu0 0.0
        %713 = vmatprep.subr.mxu0 0.0
        %714 = vmatpush1.xpose.msra.mxu0 0.0
        %715 = vmatprep.subr.mxu0 0.0
        %716 = vmatpush1.xpose.msra.mxu0 0.0
        %717 = vmatprep.subr.mxu0 0.0
        %718 = vmatpush1.xpose.msra.mxu0 0.0
        %719 = vmatprep.subr.mxu0 0.0
        %720 = vmatpush1.xpose.msra.mxu0 0.0
        %721 = vmatprep.subr.mxu0 0.0
        %722 = vmatpush1.xpose.msra.mxu0 0.0
        %723 = vmatprep.subr.mxu0 0.0
        %724 = vmatpush1.xpose.msra.mxu0 0.0
        %725 = vmatprep.subr.mxu0 0.0
        %726 = vmatpush1.xpose.msra.mxu0 0.0
        %727 = vmatprep.subr.mxu0 0.0
        %728 = vmatpush1.xpose.msra.mxu0 0.0
        %729 = vmatprep.subr.mxu0 0.0
        %730 = vmatpush1.xpose.msra.mxu0 0.0
        %731 = vmatprep.subr.mxu0 0.0
        %732 = vmatpush1.xpose.msra.mxu0 0.0
        %733 = vmatprep.subr.mxu0 0.0
        %734 = vmatpush1.xpose.msra.mxu0 0.0
        %735 = vmatprep.subr.mxu0 0.0
        %736 = vmatpush1.xpose.msra.mxu0 0.0
        %737 = vmatprep.subr.mxu0 0.0
        %738 = vmatpush1.xpose.msra.mxu0 0.0
        %739 = vmatprep.mubr.f32.mxu0 0.0
        %740 = vmatmul.mubr.f32.gmra.mrb[0].mxu0 %v671
        %v741 = vpop.f32.mrb[0].mxu0
        %v742 = vadd.f32 0.0, %v741
        %v743 = vpop.f32.mrb[0].mxu0
        %744 = vdwg.mxu0
        %v745 = vsel %vm407, %v742, -inf
        %746 = vmax.xlane.f32.xlu0 %v745
        %v747 = vpop.xlane.xlu0 %746
        %v748 = vsub.f32 %v742, %v747
        %v749 = vmul.f32 %v748, 1.442695
        %v750 = vpow.pop %v749
        %v751 = vsel %vm407, %v750, 0.0
        %752 = vadd.xlane.f32.xlu0 %v751
        %v753 = vpop.xlane.xlu0 %752
        %754 = vrot.lane.b32.xlu0 %v328, 64
        %v755 = vpop.permute.xlu0 %754
        %v758 = vsel %vm407, %v750, 0
        %760 = vmatprep.subr.mxu0 0.0
        %761 = vmatpush1.msra.mxu0 %v755
        %762 = vmatprep.subr.mxu0 0.0
        %763 = vmatpush1.msra.mxu0 0.0
        %764 = vmatprep.subr.mxu0 0.0
        %765 = vmatpush1.msra.mxu0 0.0
        %766 = vmatprep.subr.mxu0 0.0
        %767 = vmatpush1.msra.mxu0 0.0
        %768 = vmatprep.subr.mxu0 0.0
        %769 = vmatpush1.msra.mxu0 0.0
        %770 = vmatprep.subr.mxu0 0.0
        %771 = vmatpush1.msra.mxu0 0.0
        %772 = vmatprep.subr.mxu0 0.0
        %773 = vmatpush1.msra.mxu0 0.0
        %774 = vmatprep.subr.mxu0 0.0
        %775 = vmatpush1.msra.mxu0 0.0
        %776 = vmatprep.subr.mxu0 0.0
        %777 = vmatpush1.msra.mxu0 0.0
        %778 = vmatprep.subr.mxu0 0.0
        %779 = vmatpush1.msra.mxu0 0.0
        %780 = vmatprep.subr.mxu0 0.0
        %781 = vmatpush1.msra.mxu0 0.0
        %782 = vmatprep.subr.mxu0 0.0
        %783 = vmatpush1.msra.mxu0 0.0
        %784 = vmatprep.subr.mxu0 0.0
        %785 = vmatpush1.msra.mxu0 0.0
        %786 = vmatprep.subr.mxu0 0.0
        %787 = vmatpush1.msra.mxu0 0.0
        %788 = vmatprep.subr.mxu0 0.0
        %789 = vmatpush1.msra.mxu0 0.0
        %790 = vmatprep.subr.mxu0 0.0
        %791 = vmatpush1.msra.mxu0 0.0
        %792 = vmatprep.subr.mxu0 0.0
        %793 = vmatpush1.msra.mxu0 0.0
        %794 = vmatprep.subr.mxu0 0.0
        %795 = vmatpush1.msra.mxu0 0.0
        %796 = vmatprep.subr.mxu0 0.0
        %797 = vmatpush1.msra.mxu0 0.0
        %798 = vmatprep.subr.mxu0 0.0
        %799 = vmatpush1.msra.mxu0 0.0
        %800 = vmatprep.subr.mxu0 0.0
        %801 = vmatpush1.msra.mxu0 0.0
        %802 = vmatprep.subr.mxu0 0.0
        %803 = vmatpush1.msra.mxu0 0.0
        %804 = vmatprep.subr.mxu0 0.0
        %805 = vmatpush1.msra.mxu0 0.0
        %806 = vmatprep.subr.mxu0 0.0
        %807 = vmatpush1.msra.mxu0 0.0
        %808 = vmatprep.subr.mxu0 0.0
        %809 = vmatpush1.msra.mxu0 0.0
        %810 = vmatprep.subr.mxu0 0.0
        %811 = vmatpush1.msra.mxu0 0.0
        %812 = vmatprep.subr.mxu0 0.0
        %813 = vmatpush1.msra.mxu0 0.0
        %814 = vmatprep.subr.mxu0 0.0
        %815 = vmatpush1.msra.mxu0 0.0
        %816 = vmatprep.subr.mxu0 0.0
        %817 = vmatpush1.msra.mxu0 0.0
        %818 = vmatprep.subr.mxu0 0.0
        %819 = vmatpush1.msra.mxu0 0.0
        %820 = vmatprep.subr.mxu0 0.0
        %821 = vmatpush1.msra.mxu0 0.0
        %822 = vmatprep.subr.mxu0 0.0
        %823 = vmatpush1.msra.mxu0 0.0
        %824 = vmatprep.mubr.f32.mxu0 0.0
        %825 = vmatmul.mubr.f32.gmra.mrb[0].mxu0 %v758
        %v826 = vpop.f32.mrb[0].mxu0
        %v827 = vadd.f32 0.0, %v826
        %v828 = vpop.f32.mrb[0].mxu0
        %829 = vdwg.mxu0
        %v830 = vrcp.pop %v753
        %v831 = vmul.f32 1.0, %v830
        %v832 = vmul.f32 %v827, %v831
        %834 = vrot.lane.b32.xlu0 %v832, 64
        %v835 = vpop.permute.xlu0 %834
        %vm837 = vcmask 785920
        %838 = vst.msk [vmem:[#allocation2] sm:$0xff] %vm837, %v835
        %839 = vrot.lane.b32.xlu0 %v329, 32
        %v840 = vpop.permute.xlu0 %839
        %841 = vrot.lane.b32.xlu0 %v327, 32
        %v842 = vpop.permute.xlu0 %841
        %v843 = vsel %vm330, %v840, 0
        %v845 = vsel %vm330, %v842, 0
        %847 = vmatprep.subr.mxu0 0.0
        %848 = vmatpush1.xpose.msra.mxu0 %v845
        %849 = vmatprep.subr.mxu0 0.0
        %850 = vmatpush1.xpose.msra.mxu0 0.0
        %851 = vmatprep.subr.mxu0 0.0
        %852 = vmatpush1.xpose.msra.mxu0 0.0
        %853 = vmatprep.subr.mxu0 0.0
        %854 = vmatpush1.xpose.msra.mxu0 0.0
        %855 = vmatprep.subr.mxu0 0.0
        %856 = vmatpush1.xpose.msra.mxu0 0.0
        %857 = vmatprep.subr.mxu0 0.0
        %858 = vmatpush1.xpose.msra.mxu0 0.0
        %859 = vmatprep.subr.mxu0 0.0
        %860 = vmatpush1.xpose.msra.mxu0 0.0
        %861 = vmatprep.subr.mxu0 0.0
        %862 = vmatpush1.xpose.msra.mxu0 0.0
        %863 = vmatprep.subr.mxu0 0.0
        %864 = vmatpush1.xpose.msra.mxu0 0.0
        %865 = vmatprep.subr.mxu0 0.0
        %866 = vmatpush1.xpose.msra.mxu0 0.0
        %867 = vmatprep.subr.mxu0 0.0
        %868 = vmatpush1.xpose.msra.mxu0 0.0
        %869 = vmatprep.subr.mxu0 0.0
        %870 = vmatpush1.xpose.msra.mxu0 0.0
        %871 = vmatprep.subr.mxu0 0.0
        %872 = vmatpush1.xpose.msra.mxu0 0.0
        %873 = vmatprep.subr.mxu0 0.0
        %874 = vmatpush1.xpose.msra.mxu0 0.0
        %875 = vmatprep.subr.mxu0 0.0
        %876 = vmatpush1.xpose.msra.mxu0 0.0
        %877 = vmatprep.subr.mxu0 0.0
        %878 = vmatpush1.xpose.msra.mxu0 0.0
        %879 = vmatprep.subr.mxu0 0.0
        %880 = vmatpush1.xpose.msra.mxu0 0.0
        %881 = vmatprep.subr.mxu0 0.0
        %882 = vmatpush1.xpose.msra.mxu0 0.0
        %883 = vmatprep.subr.mxu0 0.0
        %884 = vmatpush1.xpose.msra.mxu0 0.0
        %885 = vmatprep.subr.mxu0 0.0
        %886 = vmatpush1.xpose.msra.mxu0 0.0
        %887 = vmatprep.subr.mxu0 0.0
        %888 = vmatpush1.xpose.msra.mxu0 0.0
        %889 = vmatprep.subr.mxu0 0.0
        %890 = vmatpush1.xpose.msra.mxu0 0.0
        %891 = vmatprep.subr.mxu0 0.0
        %892 = vmatpush1.xpose.msra.mxu0 0.0
        %893 = vmatprep.subr.mxu0 0.0
        %894 = vmatpush1.xpose.msra.mxu0 0.0
        %895 = vmatprep.subr.mxu0 0.0
        %896 = vmatpush1.xpose.msra.mxu0 0.0
        %897 = vmatprep.subr.mxu0 0.0
        %898 = vmatpush1.xpose.msra.mxu0 0.0
        %899 = vmatprep.subr.mxu0 0.0
        %900 = vmatpush1.xpose.msra.mxu0 0.0
        %901 = vmatprep.subr.mxu0 0.0
        %902 = vmatpush1.xpose.msra.mxu0 0.0
        %903 = vmatprep.subr.mxu0 0.0
        %904 = vmatpush1.xpose.msra.mxu0 0.0
        %905 = vmatprep.subr.mxu0 0.0
        %906 = vmatpush1.xpose.msra.mxu0 0.0
        %907 = vmatprep.subr.mxu0 0.0
        %908 = vmatpush1.xpose.msra.mxu0 0.0
        %909 = vmatprep.subr.mxu0 0.0
        %910 = vmatpush1.xpose.msra.mxu0 0.0
        %911 = vmatprep.mubr.f32.mxu0 0.0
        %912 = vmatmul.mubr.f32.gmra.mrb[0].mxu0 %v843
        %v913 = vpop.f32.mrb[0].mxu0
        %v914 = vadd.f32 0.0, %v913
        %v915 = vpop.f32.mrb[0].mxu0
        %916 = vdwg.mxu0
        %v917 = vsel %vm407, %v914, -inf
        %918 = vmax.xlane.f32.xlu0 %v917
        %v919 = vpop.xlane.xlu0 %918
        %v920 = vsub.f32 %v914, %v919
        %v921 = vmul.f32 %v920, 1.442695
        %v922 = vpow.pop %v921
        %v923 = vsel %vm407, %v922, 0.0
        %924 = vadd.xlane.f32.xlu0 %v923
        %v925 = vpop.xlane.xlu0 %924
        %926 = vrot.lane.b32.xlu0 %v328, 32
        %v927 = vpop.permute.xlu0 %926
        %v930 = vsel %vm407, %v922, 0
        %932 = vmatprep.subr.mxu0 0.0
        %933 = vmatpush1.msra.mxu0 %v927
        %934 = vmatprep.subr.mxu0 0.0
        %935 = vmatpush1.msra.mxu0 0.0
        %936 = vmatprep.subr.mxu0 0.0
        %937 = vmatpush1.msra.mxu0 0.0
        %938 = vmatprep.subr.mxu0 0.0
        %939 = vmatpush1.msra.mxu0 0.0
        %940 = vmatprep.subr.mxu0 0.0
        %941 = vmatpush1.msra.mxu0 0.0
        %942 = vmatprep.subr.mxu0 0.0
        %943 = vmatpush1.msra.mxu0 0.0
        %944 = vmatprep.subr.mxu0 0.0
        %945 = vmatpush1.msra.mxu0 0.0
        %946 = vmatprep.subr.mxu0 0.0
        %947 = vmatpush1.msra.mxu0 0.0
        %948 = vmatprep.subr.mxu0 0.0
        %949 = vmatpush1.msra.mxu0 0.0
        %950 = vmatprep.subr.mxu0 0.0
        %951 = vmatpush1.msra.mxu0 0.0
        %952 = vmatprep.subr.mxu0 0.0
        %953 = vmatpush1.msra.mxu0 0.0
        %954 = vmatprep.subr.mxu0 0.0
        %955 = vmatpush1.msra.mxu0 0.0
        %956 = vmatprep.subr.mxu0 0.0
        %957 = vmatpush1.msra.mxu0 0.0
        %958 = vmatprep.subr.mxu0 0.0
        %959 = vmatpush1.msra.mxu0 0.0
        %960 = vmatprep.subr.mxu0 0.0
        %961 = vmatpush1.msra.mxu0 0.0
        %962 = vmatprep.subr.mxu0 0.0
        %963 = vmatpush1.msra.mxu0 0.0
        %964 = vmatprep.subr.mxu0 0.0
        %965 = vmatpush1.msra.mxu0 0.0
        %966 = vmatprep.subr.mxu0 0.0
        %967 = vmatpush1.msra.mxu0 0.0
        %968 = vmatprep.subr.mxu0 0.0
        %969 = vmatpush1.msra.mxu0 0.0
        %970 = vmatprep.subr.mxu0 0.0
        %971 = vmatpush1.msra.mxu0 0.0
        %972 = vmatprep.subr.mxu0 0.0
        %973 = vmatpush1.msra.mxu0 0.0
        %974 = vmatprep.subr.mxu0 0.0
        %975 = vmatpush1.msra.mxu0 0.0
        %976 = vmatprep.subr.mxu0 0.0
        %977 = vmatpush1.msra.mxu0 0.0
        %978 = vmatprep.subr.mxu0 0.0
        %979 = vmatpush1.msra.mxu0 0.0
        %980 = vmatprep.subr.mxu0 0.0
        %981 = vmatpush1.msra.mxu0 0.0
        %982 = vmatprep.subr.mxu0 0.0
        %983 = vmatpush1.msra.mxu0 0.0
        %984 = vmatprep.subr.mxu0 0.0
        %985 = vmatpush1.msra.mxu0 0.0
        %986 = vmatprep.subr.mxu0 0.0
        %987 = vmatpush1.msra.mxu0 0.0
        %988 = vmatprep.subr.mxu0 0.0
        %989 = vmatpush1.msra.mxu0 0.0
        %990 = vmatprep.subr.mxu0 0.0
        %991 = vmatpush1.msra.mxu0 0.0
        %992 = vmatprep.subr.mxu0 0.0
        %993 = vmatpush1.msra.mxu0 0.0
        %994 = vmatprep.subr.mxu0 0.0
        %995 = vmatpush1.msra.mxu0 0.0
        %996 = vmatprep.mubr.f32.mxu0 0.0
        %997 = vmatmul.mubr.f32.gmra.mrb[0].mxu0 %v930
        %v998 = vpop.f32.mrb[0].mxu0
        %v999 = vadd.f32 0.0, %v998
        %v1000 = vpop.f32.mrb[0].mxu0
        %1001 = vdwg.mxu0
        %v1002 = vrcp.pop %v925
        %v1003 = vmul.f32 1.0, %v1002
        %v1004 = vmul.f32 %v999, %v1003
        %1006 = vrot.lane.b32.xlu0 %v1004, 96
        %v1007 = vpop.permute.xlu0 %1006
        %vm1009 = vcmask 1048320
        %1010 = vst.msk [vmem:[#allocation2] sm:$0xff] %vm1009, %v1007
        %v1011 = vld [vmem:[#allocation2] sm:$0xff]
        %v1012 = vld [vmem:[#allocation9] sm:$0xff]
        %v1013 = vld [vmem:[#allocation9 + $0x8] sm:$0xff]
        %v1014 = vld [vmem:[#allocation9 + $0x10] sm:$0xff]
        %v1015 = vld [vmem:[#allocation9 + $0x18] sm:$0xff]
        %v1016 = vld [vmem:[#allocation9 + $0x20] sm:$0xff]
        %v1017 = vld [vmem:[#allocation9 + $0x28] sm:$0xff]
        %v1018 = vld [vmem:[#allocation9 + $0x30] sm:$0xff]
        %v1019 = vld [vmem:[#allocation9 + $0x38] sm:$0xff]
        %v1020 = vld [vmem:[#allocation9 + $0x40] sm:$0xff]
        %v1021 = vld [vmem:[#allocation9 + $0x48] sm:$0xff]
        %v1022 = vld [vmem:[#allocation9 + $0x50] sm:$0xff]
        %v1023 = vld [vmem:[#allocation9 + $0x58] sm:$0xff]
        %v1024 = vld [vmem:[#allocation9 + $0x60] sm:$0xff]
        %v1025 = vld [vmem:[#allocation9 + $0x68] sm:$0xff]
        %v1026 = vld [vmem:[#allocation9 + $0x70] sm:$0xff]
        %v1027 = vld [vmem:[#allocation9 + $0x78] sm:$0xff]
        %v1028 = vld [vmem:[%s4] sm:$0x1]
        %v1030 = vlaneseq
        %v1031 = vshrl.u32 %v1030, 7
        %v1032 = vsub.s32 0, %v1031
        %v1033 = vrot.slane %v1028, %v1032
        %1035 = vmatprep.subr.mxu0 0.0
        %1036 = vmatpush1.msra.mxu0 %v1012
        %1037 = vmatprep.subr.mxu0 0.0
        %1038 = vmatpush1.msra.mxu0 %v1013
        %1039 = vmatprep.subr.mxu0 0.0
        %1040 = vmatpush1.msra.mxu0 %v1014
        %1041 = vmatprep.subr.mxu0 0.0
        %1042 = vmatpush1.msra.mxu0 %v1015
        %1043 = vmatprep.subr.mxu0 0.0
        %1044 = vmatpush1.msra.mxu0 %v1016
        %1045 = vmatprep.subr.mxu0 0.0
        %1046 = vmatpush1.msra.mxu0 %v1017
        %1047 = vmatprep.subr.mxu0 0.0
        %1048 = vmatpush1.msra.mxu0 %v1018
        %1049 = vmatprep.subr.mxu0 0.0
        %1050 = vmatpush1.msra.mxu0 %v1019
        %1051 = vmatprep.subr.mxu0 0.0
        %1052 = vmatpush1.msra.mxu0 %v1020
        %1053 = vmatprep.subr.mxu0 0.0
        %1054 = vmatpush1.msra.mxu0 %v1021
        %1055 = vmatprep.subr.mxu0 0.0
        %1056 = vmatpush1.msra.mxu0 %v1022
        %1057 = vmatprep.subr.mxu0 0.0
        %1058 = vmatpush1.msra.mxu0 %v1023
        %1059 = vmatprep.subr.mxu0 0.0
        %1060 = vmatpush1.msra.mxu0 %v1024
        %1061 = vmatprep.subr.mxu0 0.0
        %1062 = vmatpush1.msra.mxu0 %v1025
        %1063 = vmatprep.subr.mxu0 0.0
        %1064 = vmatpush1.msra.mxu0 %v1026
        %1065 = vmatprep.subr.mxu0 0.0
        %1066 = vmatpush1.msra.mxu0 %v1027
        %1067 = vmatprep.subr.mxu0 0.0
        %1068 = vmatpush1.msra.mxu0 0.0
        %1069 = vmatprep.subr.mxu0 0.0
        %1070 = vmatpush1.msra.mxu0 0.0
        %1071 = vmatprep.subr.mxu0 0.0
        %1072 = vmatpush1.msra.mxu0 0.0
        %1073 = vmatprep.subr.mxu0 0.0
        %1074 = vmatpush1.msra.mxu0 0.0
        %1075 = vmatprep.subr.mxu0 0.0
        %1076 = vmatpush1.msra.mxu0 0.0
        %1077 = vmatprep.subr.mxu0 0.0
        %1078 = vmatpush1.msra.mxu0 0.0
        %1079 = vmatprep.subr.mxu0 0.0
        %1080 = vmatpush1.msra.mxu0 0.0
        %1081 = vmatprep.subr.mxu0 0.0
        %1082 = vmatpush1.msra.mxu0 0.0
        %1083 = vmatprep.subr.mxu0 0.0
        %1084 = vmatpush1.msra.mxu0 0.0
        %1085 = vmatprep.subr.mxu0 0.0
        %1086 = vmatpush1.msra.mxu0 0.0
        %1087 = vmatprep.subr.mxu0 0.0
        %1088 = vmatpush1.msra.mxu0 0.0
        %1089 = vmatprep.subr.mxu0 0.0
        %1090 = vmatpush1.msra.mxu0 0.0
        %1091 = vmatprep.subr.mxu0 0.0
        %1092 = vmatpush1.msra.mxu0 0.0
        %1093 = vmatprep.subr.mxu0 0.0
        %1094 = vmatpush1.msra.mxu0 0.0
        %1095 = vmatprep.subr.mxu0 0.0
        %1096 = vmatpush1.msra.mxu0 0.0
        %1097 = vmatprep.subr.mxu0 0.0
        %1098 = vmatpush1.msra.mxu0 0.0
        %1099 = vmatprep.mubr.f32.mxu0 0.0
        %1100 = vmatmul.mubr.f32.gmra.mrb[0].mxu0 %v1011
        %v1101 = vpop.f32.mrb[0].mxu0
        %v1102 = vadd.f32 %v1033, %v1101
        %v1103 = vpop.f32.mrb[0].mxu0
        %1104 = vdwg.mxu0
        %1105 = vst [vmem:[%s325] sm:$0xff] %v1102
        %s1106 = sand.u32 %s154, 1
        %s1107 = scalar_lea.sflag [#allocation5], %s1106
        %s1108 = sand.u32 %s154, 1
        %s1109 = smul.addr %s1108, 8
        %s1110 = scalar_lea.vmem [#allocation11], %s1109
        // Predicated region
        $region57: #{tpu_custom_call.1} parent=39 // pred_check
          %p1111 = pneg %p164
        $region58: #{tpu_custom_call.1} parent=39 // pred_check_branch
          %1113 = sbr.rel (%p1111) target = $region60
        $region59: #{tpu_custom_call.1} parent=39 // pred_region
          %s1115 = ssub.s32 128, 128
          %1116 = vsyncadd %s1107, %s1115
          %s1117 = smul.addr %s26, 128
          %s1118 = scalar_lea.hbm %s5, %s1117
          %s1120 = sshll.u32 %s1110, 4
          %s1121 = int_to_ptr.vmem [resolvable:$true] %s1120
          %1123 = dma.vmem_to_hbm [thread:$0]  %s1121, 128, %s1118, %s1107
        $region60: #{tpu_custom_call.1} parent=39 // pred_fallthru
          _
      $region40: #{tpu_custom_call.1} parent=5 // pred_fallthru
        _
      %p1124 = scmp.le.s32.totalorder 2, %s21
      // Predicated region
      $region61: #{tpu_custom_call.1} parent=5 // pred_check
        %p1125 = pneg %p1124
      $region62: #{tpu_custom_call.1} parent=5 // pred_check_branch
        %1127 = sbr.rel (%p1125) target = $region64
      $region63: #{tpu_custom_call.1} parent=5 // pred_region
        %s1128 = ssub.s32 %s21, 2
        // Predicated region
        $region65: #{tpu_custom_call.1} parent=63 // pred_check
          %p1129 = pneg %p170
        $region66: #{tpu_custom_call.1} parent=63 // pred_check_branch
          %1131 = sbr.rel (%p1129) target = $region68
        $region67: #{tpu_custom_call.1} parent=63 // pred_region
          %s1132 = sand.u32 %s155, 1
          %s1133 = scalar_lea.sflag [#allocation5], %s1132
          %s1134 = sand.u32 %s155, 1
          %s1135 = smul.addr %s1134, 8
          %s1136 = scalar_lea.vmem [#allocation11], %s1135
          %1137 = dma.done %s1133, 128
        $region68: #{tpu_custom_call.1} parent=63 // pred_fallthru
          _
      $region64: #{tpu_custom_call.1} parent=5 // pred_fallthru
        _
    $region6: #{tpu_custom_call.1} parent=1 // loop_footer
      %s25 = sadd.s32 1, %s21
    $region7: #{tpu_custom_call.1} parent=1 // loop_footer_branch
      %20 = sbr.rel target = $region3
    $region8: #{tpu_custom_call.1} parent=1 // loop_exit
      _
    %1138 = vsyncpa [#allocation4], 1
    %s1139 = scalar_lea.sflag [#allocation4], 1
    %1140 = vsyncpa %s1139, 1
    %1141 = vsyncpa [#allocation7], 1
    %s1142 = scalar_lea.sflag [#allocation7], 1
    %1143 = vsyncpa %s1142, 1
    %1144 = vsyncpa [#allocation10], 1
    %1145 = vsyncpa [#allocation5], 1
    %s1146 = scalar_lea.sflag [#allocation5], 1
    %1147 = vsyncpa %s1146, 1

</llo_original>
